<compile_context>
chip_gen: v7x
topology: tpu7x:2x2x1
jax: 0.10.0
libtpu: 0.0.40
codegen_flags: <defaults>
</compile_context>

<pallas_src>
import functools

import jax
import jax.numpy as jnp
from jax import lax
from jax.experimental import pallas as pl
from jax.experimental.pallas import tpu as pltpu


def _round_up(x, m):
    return (x + m - 1) // m * m


def _warp_kernel(cf_ref, x_ref, o_ref, *, M, P, P_pad, C,
                 scale_m, scale_p, mxu_dtype):
    # cf_ref: (4, T)  rows = [coord_m, coord_p, flow_m, flow_p], f32
    # x_ref:  (C*P_pad, M)  source frame, rows = c*P_pad + p, lanes = m
    # o_ref:  (C, T)        warped output tile
    T = o_ref.shape[-1]

    cm = cf_ref[0:1, :]
    cp = cf_ref[1:2, :]
    fm = cf_ref[2:3, :]
    fp = cf_ref[3:4, :]

    # Fused affine: warp()'s max(dim-1,1) normalization composed with
    # grid_sample's align_corners=False un-normalization, then 'border' clamp.
    m = jnp.clip((cm - fm) * scale_m - 0.5, 0.0, float(M - 1))
    p = jnp.clip((cp - fp) * scale_p - 0.5, 0.0, float(P - 1))

    m0 = jnp.floor(m)
    p0 = jnp.floor(p)
    tm_ = m - m0
    tp_ = p - p0
    m0i = m0.astype(jnp.int32)
    m1i = jnp.minimum(m0i + 1, M - 1)
    p0i = p0.astype(jnp.int32)
    p1i = jnp.minimum(p0i + 1, P - 1)

    # Two-hot interpolation weights via selects.  At the right/bottom border
    # m0i == m1i and the two selects sum to 1 at that index -> exact 'border'
    # padding semantics.
    msrc = lax.broadcasted_iota(jnp.int32, (M, T), 0)
    w_m = (jnp.where(msrc == m0i, 1.0 - tm_, 0.0)
           + jnp.where(msrc == m1i, tm_, 0.0))                  # (M, T)
    psrc = lax.broadcasted_iota(jnp.int32, (P_pad, T), 0)
    w_p = (jnp.where(psrc == p0i, 1.0 - tp_, 0.0)
           + jnp.where(psrc == p1i, tp_, 0.0))                  # (P_pad, T)

    # Stage 1 (MXU): contract the larger spatial axis.
    lhs = x_ref[...].astype(mxu_dtype)                          # (C*P_pad, M)
    r = jnp.dot(lhs, w_m.astype(mxu_dtype),
                preferred_element_type=jnp.float32)             # (C*P_pad, T)

    # Stage 2 (VPU/XLU): weighted reduce over the smaller axis, all channels
    # at once.  Padded rows p >= P carry zero weight in w_p (and zero data).
    r3 = r.reshape(C, P_pad, T)
    o_ref[...] = jnp.sum(r3 * w_p[None, :, :], axis=1).astype(o_ref.dtype)


def temporal_loss_forward(first_frame, forward_flow, *, tile_s=None,
                          mxu_dtype=jnp.float32):
    """TemporalLoss(data_w=True).forward(first_frame, forward_flow).

    first_frame:  (B, C, H, W) float32
    forward_flow: (B, 2, H, W) float32
    returns:      (B, C, H, W) warped first_frame
    """
    B, C, H, W = first_frame.shape
    S = H * W

    # Stage-1 MXU contracts the larger spatial axis; stage-2 reduces min(H,W).
    contract_w = W >= H
    M, P = (W, H) if contract_w else (H, W)
    P_pad = _round_up(P, 8)      # 8-aligned per-channel sublane segments

    # Frame laid out as (B, C*P_pad, M): rows = channel-major P axis, lanes =
    # the contracted M axis.  Padded rows are zero (and zero-weighted).
    if contract_w:
        x_pad = jnp.pad(first_frame, ((0, 0), (0, 0), (0, P_pad - H), (0, 0)))
        x2 = x_pad.reshape(B, C * P_pad, W)
    else:
        x_pad = jnp.pad(first_frame, ((0, 0), (0, 0), (0, 0), (0, P_pad - W)))
        x2 = x_pad.transpose(0, 1, 3, 2).reshape(B, C * P_pad, H)

    # --- VMEM-budget-driven tile and limit selection ------------------------
    s128 = _round_up(S, 128)
    try:
        vmem_cap = int(pltpu.get_tpu_info().vmem_capacity_bytes)
    except Exception:
        vmem_cap = 64 * 1024 * 1024      # conservative: v7x per-core VMEM
    budget = vmem_cap - 8 * 1024 * 1024  # headroom for compiler scratch

    def vmem_bytes(t, frame_bufs):
        frame = frame_bufs * C * P_pad * M * 4
        io = 2 * (4 * t * 4 + C * t * 4)                    # cf + out tiles (2-buf)
        interm = (M * t + P_pad * t + C * P_pad * t) * 4    # w_m, w_p, r
        return frame + io + interm

    if tile_s is None:
        tile_s = 128
        for cand in (2048, 1024, 512, 256):   # big tiles on 128 MiB chips,
            if (cand <= s128                   # smaller on v7x / tiny frames
                    and vmem_bytes(cand, 1) <= budget
                    and B * pl.cdiv(S, cand) >= 8):
                tile_s = cand
                break
    tile_s = _round_up(min(tile_s, s128), 128)
    S_pad = _round_up(S, tile_s)

    vmem_limit = max(32 * 1024 * 1024, int(vmem_bytes(tile_s, 2) * 1.25))
    vmem_limit = int(min(vmem_limit, vmem_cap - 4 * 1024 * 1024))

    # --- fused coords + flow operand: (B, 4, S_pad) --------------------------
    flow = forward_flow.astype(jnp.float32).reshape(B, 2, S)
    xx = jnp.broadcast_to(jnp.arange(W, dtype=jnp.float32)[None, :], (H, W)).reshape(S)
    yy = jnp.broadcast_to(jnp.arange(H, dtype=jnp.float32)[:, None], (H, W)).reshape(S)
    if contract_w:
        coord_m, coord_p = xx, yy
        flow_m, flow_p = flow[:, 0], flow[:, 1]
        scale_m = float(W) / float(max(W - 1, 1))
        scale_p = float(H) / float(max(H - 1, 1))
    else:
        coord_m, coord_p = yy, xx
        flow_m, flow_p = flow[:, 1], flow[:, 0]
        scale_m = float(H) / float(max(H - 1, 1))
        scale_p = float(W) / float(max(W - 1, 1))
    cf = jnp.stack([jnp.broadcast_to(coord_m[None], (B, S)),
                    jnp.broadcast_to(coord_p[None], (B, S)),
                    flow_m, flow_p], axis=1)
    cf = jnp.pad(cf, ((0, 0), (0, 0), (0, S_pad - S)))

    # Advisory cost estimate: strongly compute-bound at real resolutions.
    flops = 2 * B * (C * P_pad) * M * S_pad + 2 * B * C * P_pad * S_pad
    bytes_accessed = int((x2.size + cf.size + B * C * S_pad) * 4)
    ce = pl.CostEstimate(flops=int(flops), transcendentals=0,
                         bytes_accessed=bytes_accessed)

    kernel = functools.partial(_warp_kernel, M=M, P=P, P_pad=P_pad, C=C,
                               scale_m=scale_m, scale_p=scale_p,
                               mxu_dtype=mxu_dtype)

    cf_spec = pl.BlockSpec((pl.Squeezed(), 4, tile_s), lambda b, t: (b, 0, t))
    out_spec = pl.BlockSpec((pl.Squeezed(), C, tile_s), lambda b, t: (b, 0, t))
    frame_shape = (pl.Squeezed(), C * P_pad, M)
    frame_map = lambda b, t: (b, 0, 0)

    def call(frame_spec):
        return pl.pallas_call(
            kernel,
            out_shape=jax.ShapeDtypeStruct((B, C, S_pad), first_frame.dtype),
            grid_spec=pltpu.PrefetchScalarGridSpec(
                num_scalar_prefetch=0,
                grid=(B, S_pad // tile_s),
                in_specs=[cf_spec, frame_spec],
                out_specs=out_spec,
            ),
            compiler_params=pltpu.CompilerParams(
                dimension_semantics=("parallel", "parallel"),
                vmem_limit_bytes=vmem_limit,
            ),
            cost_estimate=ce,
        )(cf, x2)

    try:
        # Frame block index is constant across the inner tile axis: a second
        # pipeline buffer buys no overlap, so single-buffer it (halves the
        # dominant VMEM term; the difference between fitting and spilling on
        # v7x at HD sizes).
        out = call(pl.BlockSpec(frame_shape, frame_map,
                                pipeline_mode=pl.Buffered(1)))
    except Exception:
        # pipeline_mode / Buffered(1) unsupported on this jax version: fall
        # back to the default double-buffered operand (still correct).
        out = call(pl.BlockSpec(frame_shape, frame_map))

    return out[:, :, :S].reshape(B, C, H, W)


def _reference_warp(x, flo):
    """Pure-JAX reference of torch warp() + grid_sample(border, align_corners=False)."""
    B, C, H, W = x.shape
    xx = jnp.broadcast_to(jnp.arange(W, dtype=jnp.float32), (H, W))
    yy = jnp.broadcast_to(jnp.arange(H, dtype=jnp.float32)[:, None], (H, W))
    vx = xx[None] - flo[:, 0]
    vy = yy[None] - flo[:, 1]
    gx = 2.0 * vx / max(W - 1, 1) - 1.0
    gy = 2.0 * vy / max(H - 1, 1) - 1.0
    ix = ((gx + 1.0) * W - 1.0) * 0.5
    iy = ((gy + 1.0) * H - 1.0) * 0.5
    ix = jnp.clip(ix, 0.0, W - 1)
    iy = jnp.clip(iy, 0.0, H - 1)
    ix0 = jnp.floor(ix)
    iy0 = jnp.floor(iy)
    tx = ix - ix0
    ty = iy - iy0
    ix0i = jnp.clip(ix0.astype(jnp.int32), 0, W - 1)
    ix1i = jnp.clip(ix0i + 1, 0, W - 1)
    iy0i = jnp.clip(iy0.astype(jnp.int32), 0, H - 1)
    iy1i = jnp.clip(iy0i + 1, 0, H - 1)
    S = H * W
    xf = x.reshape(B, C, S)

    def gather(iyi, ixi):
        idx = (iyi * W + ixi).reshape(B, 1, S)
        idx = jnp.broadcast_to(idx, (B, C, S))
        return jnp.take_along_axis(xf, idx, axis=2).reshape(B, C, H, W)

    nw = gather(iy0i, ix0i)
    ne = gather(iy0i, ix1i)
    sw = gather(iy1i, ix0i)
    se = gather(iy1i, ix1i)
    w_nw = ((1.0 - tx) * (1.0 - ty))[:, None]
    w_ne = (tx * (1.0 - ty))[:, None]
    w_sw = ((1.0 - tx) * ty)[:, None]
    w_se = (tx * ty)[:, None]
    return nw * w_nw + ne * w_ne + sw * w_sw + se * w_se


if __name__ == "__main__":
    k1, k2, k3, k4 = jax.random.split(jax.random.PRNGKey(0), 4)

    # Square frame: exercises the contract-W (W >= H) layout, multi-tile grid.
    B, C, H, W = 2, 4, 16, 16
    first_frame = jax.random.uniform(k1, (B, C, H, W), dtype=jnp.float32)
    forward_flow = jax.random.normal(k2, (B, 2, H, W), dtype=jnp.float32) * 2.0
    out = jax.block_until_ready(temporal_loss_forward(first_frame, forward_flow))
    ref = _reference_warp(first_frame, forward_flow)
    assert out.shape == (B, C, H, W) and out.dtype == jnp.float32
    assert jnp.allclose(out, ref, atol=1e-4, rtol=1e-4), \
        float(jnp.max(jnp.abs(out - ref)))

    # Tall frame (H > W): exercises the contract-H layout path.
    B2, C2, H2, W2 = 1, 3, 24, 16
    ff2 = jax.random.uniform(k3, (B2, C2, H2, W2), dtype=jnp.float32)
    fl2 = jax.random.normal(k4, (B2, 2, H2, W2), dtype=jnp.float32) * 3.0
    out2 = jax.block_until_ready(temporal_loss_forward(ff2, fl2))
    ref2 = _reference_warp(ff2, fl2)
    assert jnp.allclose(out2, ref2, atol=1e-4, rtol=1e-4), \
        float(jnp.max(jnp.abs(out2 - ref2)))

    print("KERNEL_OK")
</pallas_src>

<mosaic_0001>
module attributes {stable_mosaic.version = 11 : i64} {
  func.func @_warp_kernel(%arg0: i32, %arg1: i32, %arg2: memref<1x4x128xf32, #tpu.memory_space<vmem>>, %arg3: memref<1x64x16xf32, #tpu.memory_space<vmem>>, %arg4: memref<1x4x128xf32, #tpu.memory_space<vmem>>) attributes {dimension_semantics = [#tpu.dimension_semantics<parallel>, #tpu.dimension_semantics<parallel>], iteration_bounds = array<i64: 2, 2>, scalar_prefetch = 0 : i64, scratch_operands = 0 : i64, tpu.core_type = #tpu.core_type<tc>, window_params = [{transform_indices = @transform_0, window_bounds = array<i64: 1, 4, 128>}, {pipeline_mode = #tpu.pipeline_mode<synchronous>, transform_indices = @transform_1, window_bounds = array<i64: 1, 64, 16>}, {transform_indices = @transform_2, window_bounds = array<i64: 1, 4, 128>}]} {
    %c0 = arith.constant 0 : index
    %c0_0 = arith.constant 0 : index
    %c0_1 = arith.constant 0 : index
    %0 = vector.load %arg2[%c0, %c0_0, %c0_1] : memref<1x4x128xf32, #tpu.memory_space<vmem>>, vector<1x1x128xf32>
    %1 = vector.shape_cast %0 : vector<1x1x128xf32> to vector<1x128xf32>
    %c0_2 = arith.constant 0 : index
    %c1 = arith.constant 1 : index
    %c0_3 = arith.constant 0 : index
    %2 = vector.load %arg2[%c0_2, %c1, %c0_3] : memref<1x4x128xf32, #tpu.memory_space<vmem>>, vector<1x1x128xf32>
    %3 = vector.shape_cast %2 : vector<1x1x128xf32> to vector<1x128xf32>
    %c0_4 = arith.constant 0 : index
    %c2 = arith.constant 2 : index
    %c0_5 = arith.constant 0 : index
    %4 = vector.load %arg2[%c0_4, %c2, %c0_5] : memref<1x4x128xf32, #tpu.memory_space<vmem>>, vector<1x1x128xf32>
    %5 = vector.shape_cast %4 : vector<1x1x128xf32> to vector<1x128xf32>
    %c0_6 = arith.constant 0 : index
    %c3 = arith.constant 3 : index
    %c0_7 = arith.constant 0 : index
    %6 = vector.load %arg2[%c0_6, %c3, %c0_7] : memref<1x4x128xf32, #tpu.memory_space<vmem>>, vector<1x1x128xf32>
    %7 = vector.shape_cast %6 : vector<1x1x128xf32> to vector<1x128xf32>
    %8 = arith.subf %1, %5 : vector<1x128xf32>
    %cst = arith.constant 1.06666672 : f32
    %9 = vector.broadcast %cst : f32 to vector<1x128xf32>
    %10 = arith.mulf %8, %9 : vector<1x128xf32>
    %cst_8 = arith.constant 5.000000e-01 : f32
    %11 = vector.broadcast %cst_8 : f32 to vector<1x128xf32>
    %12 = arith.subf %10, %11 : vector<1x128xf32>
    %cst_9 = arith.constant 0.000000e+00 : f32
    %cst_10 = arith.constant 1.500000e+01 : f32
    %13 = vector.broadcast %cst_9 : f32 to vector<1x128xf32>
    %14 = arith.maximumf %13, %12 : vector<1x128xf32>
    %15 = vector.broadcast %cst_10 : f32 to vector<1x128xf32>
    %16 = arith.minimumf %15, %14 : vector<1x128xf32>
    %17 = arith.subf %3, %7 : vector<1x128xf32>
    %cst_11 = arith.constant 1.06666672 : f32
    %18 = vector.broadcast %cst_11 : f32 to vector<1x128xf32>
    %19 = arith.mulf %17, %18 : vector<1x128xf32>
    %cst_12 = arith.constant 5.000000e-01 : f32
    %20 = vector.broadcast %cst_12 : f32 to vector<1x128xf32>
    %21 = arith.subf %19, %20 : vector<1x128xf32>
    %cst_13 = arith.constant 0.000000e+00 : f32
    %cst_14 = arith.constant 1.500000e+01 : f32
    %22 = vector.broadcast %cst_13 : f32 to vector<1x128xf32>
    %23 = arith.maximumf %22, %21 : vector<1x128xf32>
    %24 = vector.broadcast %cst_14 : f32 to vector<1x128xf32>
    %25 = arith.minimumf %24, %23 : vector<1x128xf32>
    %26 = math.floor %16 : vector<1x128xf32>
    %27 = math.floor %25 : vector<1x128xf32>
    %28 = arith.subf %16, %26 : vector<1x128xf32>
    %29 = arith.subf %25, %27 : vector<1x128xf32>
    %30 = arith.fptosi %26 : vector<1x128xf32> to vector<1x128xi32>
    %c1_i32 = arith.constant 1 : i32
    %31 = vector.broadcast %c1_i32 : i32 to vector<1x128xi32>
    %32 = arith.addi %30, %31 : vector<1x128xi32>
    %c15_i32 = arith.constant 15 : i32
    %33 = vector.broadcast %c15_i32 : i32 to vector<1x128xi32>
    %34 = arith.minsi %32, %33 : vector<1x128xi32>
    %35 = arith.fptosi %27 : vector<1x128xf32> to vector<1x128xi32>
    %c1_i32_15 = arith.constant 1 : i32
    %36 = vector.broadcast %c1_i32_15 : i32 to vector<1x128xi32>
    %37 = arith.addi %35, %36 : vector<1x128xi32>
    %c15_i32_16 = arith.constant 15 : i32
    %38 = vector.broadcast %c15_i32_16 : i32 to vector<1x128xi32>
    %39 = arith.minsi %37, %38 : vector<1x128xi32>
    %40 = tpu.iota {dimensions = array<i32: 0>} : vector<16x128xi32>
    %41 = vector.broadcast %30 : vector<1x128xi32> to vector<16x128xi32>
    %42 = arith.cmpi eq, %40, %41 : vector<16x128xi32>
    %cst_17 = arith.constant 1.000000e+00 : f32
    %43 = vector.broadcast %cst_17 : f32 to vector<1x128xf32>
    %44 = arith.subf %43, %28 : vector<1x128xf32>
    %cst_18 = arith.constant 0.000000e+00 : f32
    %45 = vector.shape_cast %44 : vector<1x128xf32> to vector<1x128xf32>
    %46 = vector.broadcast %45 : vector<1x128xf32> to vector<16x128xf32>
    %47 = vector.broadcast %cst_18 : f32 to vector<16x128xf32>
    %48 = arith.select %42, %46, %47 : vector<16x128xi1>, vector<16x128xf32>
    %49 = vector.broadcast %34 : vector<1x128xi32> to vector<16x128xi32>
    %50 = arith.cmpi eq, %40, %49 : vector<16x128xi32>
    %cst_19 = arith.constant 0.000000e+00 : f32
    %51 = vector.shape_cast %28 : vector<1x128xf32> to vector<1x128xf32>
    %52 = vector.broadcast %51 : vector<1x128xf32> to vector<16x128xf32>
    %53 = vector.broadcast %cst_19 : f32 to vector<16x128xf32>
    %54 = arith.select %50, %52, %53 : vector<16x128xi1>, vector<16x128xf32>
    %55 = arith.addf %48, %54 : vector<16x128xf32>
    %56 = tpu.iota {dimensions = array<i32: 0>} : vector<16x128xi32>
    %57 = vector.broadcast %35 : vector<1x128xi32> to vector<16x128xi32>
    %58 = arith.cmpi eq, %56, %57 : vector<16x128xi32>
    %cst_20 = arith.constant 1.000000e+00 : f32
    %59 = vector.broadcast %cst_20 : f32 to vector<1x128xf32>
    %60 = arith.subf %59, %29 : vector<1x128xf32>
    %cst_21 = arith.constant 0.000000e+00 : f32
    %61 = vector.shape_cast %60 : vector<1x128xf32> to vector<1x128xf32>
    %62 = vector.broadcast %61 : vector<1x128xf32> to vector<16x128xf32>
    %63 = vector.broadcast %cst_21 : f32 to vector<16x128xf32>
    %64 = arith.select %58, %62, %63 : vector<16x128xi1>, vector<16x128xf32>
    %65 = vector.broadcast %39 : vector<1x128xi32> to vector<16x128xi32>
    %66 = arith.cmpi eq, %56, %65 : vector<16x128xi32>
    %cst_22 = arith.constant 0.000000e+00 : f32
    %67 = vector.shape_cast %29 : vector<1x128xf32> to vector<1x128xf32>
    %68 = vector.broadcast %67 : vector<1x128xf32> to vector<16x128xf32>
    %69 = vector.broadcast %cst_22 : f32 to vector<16x128xf32>
    %70 = arith.select %66, %68, %69 : vector<16x128xi1>, vector<16x128xf32>
    %71 = arith.addf %64, %70 : vector<16x128xf32>
    %c0_23 = arith.constant 0 : index
    %c0_24 = arith.constant 0 : index
    %c0_25 = arith.constant 0 : index
    %72 = vector.load %arg3[%c0_23, %c0_24, %c0_25] : memref<1x64x16xf32, #tpu.memory_space<vmem>>, vector<1x64x16xf32>
    %73 = vector.shape_cast %72 : vector<1x64x16xf32> to vector<64x16xf32>
    %cst_26 = arith.constant dense<0.000000e+00> : vector<64x128xf32>
    %74 = tpu.matmul %73, %55, %cst_26 {dimension_numbers = #tpu.dot_dimension_numbers<[1], [0], [0], [1], [0, 0, 1, 1], [], []>} : vector<64x16xf32>, vector<16x128xf32>, vector<64x128xf32> -> vector<64x128xf32>
    %75 = vector.shape_cast %74 : vector<64x128xf32> to vector<4x16x128xf32>
    %76 = vector.shape_cast %71 : vector<16x128xf32> to vector<1x16x128xf32>
    %77 = vector.broadcast %76 : vector<1x16x128xf32> to vector<4x16x128xf32>
    %78 = arith.mulf %75, %77 : vector<4x16x128xf32>
    %cst_27 = arith.constant dense<0.000000e+00> : vector<4x128xf32>
    %79 = vector.multi_reduction <add>, %78, %cst_27 [1] : vector<4x16x128xf32> to vector<4x128xf32>
    %c0_28 = arith.constant 0 : index
    %c0_29 = arith.constant 0 : index
    %c0_30 = arith.constant 0 : index
    %80 = vector.load %arg4[%c0_28, %c0_29, %c0_30] : memref<1x4x128xf32, #tpu.memory_space<vmem>>, vector<1x4x128xf32>
    %81 = vector.shape_cast %80 : vector<1x4x128xf32> to vector<4x128xf32>
    %82 = vector.shape_cast %79 : vector<4x128xf32> to vector<1x4x128xf32>
    tpu.vector_store %arg4[%c0_28, %c0_29, %c0_30], %82 {strides = array<i32>} : memref<1x4x128xf32, #tpu.memory_space<vmem>>, vector<1x4x128xf32>,
    return
  }
  func.func @transform_0(%arg0: i32, %arg1: i32) -> (i32, i32, i32) {
    %c0_i32 = arith.constant 0 : i32
    %c0_i32_0 = arith.constant 0 : i32
    return %arg0, %c0_i32, %arg1 : i32, i32, i32
  }
  func.func @transform_1(%arg0: i32, %arg1: i32) -> (i32, i32, i32) {
    %c0_i32 = arith.constant 0 : i32
    %c0_i32_0 = arith.constant 0 : i32
    %c0_i32_1 = arith.constant 0 : i32
    return %arg0, %c0_i32, %c0_i32_0 : i32, i32, i32
  }
  func.func @transform_2(%arg0: i32, %arg1: i32) -> (i32, i32, i32) {
    %c0_i32 = arith.constant 0 : i32
    %c0_i32_0 = arith.constant 0 : i32
    return %arg0, %c0_i32, %arg1 : i32, i32, i32
  }
}

module attributes {stable_mosaic.version = 11 : i64} {
  func.func @_warp_kernel(%arg0: i32, %arg1: i32, %arg2: memref<1x4x128xf32, #tpu.memory_space<vmem>>, %arg3: memref<1x64x16xf32, #tpu.memory_space<vmem>>, %arg4: memref<1x4x128xf32, #tpu.memory_space<vmem>>) attributes {dimension_semantics = [#tpu.dimension_semantics<parallel>, #tpu.dimension_semantics<parallel>], iteration_bounds = array<i64: 2, 2>, scalar_prefetch = 0 : i64, scratch_operands = 0 : i64, tpu.core_type = #tpu.core_type<tc>, window_params = [{transform_indices = @transform_0, window_bounds = array<i64: 1, 4, 128>}, {transform_indices = @transform_1, window_bounds = array<i64: 1, 64, 16>}, {transform_indices = @transform_2, window_bounds = array<i64: 1, 4, 128>}]} {
    %c0 = arith.constant 0 : index
    %c0_0 = arith.constant 0 : index
    %c0_1 = arith.constant 0 : index
    %0 = vector.load %arg2[%c0, %c0_0, %c0_1] : memref<1x4x128xf32, #tpu.memory_space<vmem>>, vector<1x1x128xf32>
    %1 = vector.shape_cast %0 : vector<1x1x128xf32> to vector<1x128xf32>
    %c0_2 = arith.constant 0 : index
    %c1 = arith.constant 1 : index
    %c0_3 = arith.constant 0 : index
    %2 = vector.load %arg2[%c0_2, %c1, %c0_3] : memref<1x4x128xf32, #tpu.memory_space<vmem>>, vector<1x1x128xf32>
    %3 = vector.shape_cast %2 : vector<1x1x128xf32> to vector<1x128xf32>
    %c0_4 = arith.constant 0 : index
    %c2 = arith.constant 2 : index
    %c0_5 = arith.constant 0 : index
    %4 = vector.load %arg2[%c0_4, %c2, %c0_5] : memref<1x4x128xf32, #tpu.memory_space<vmem>>, vector<1x1x128xf32>
    %5 = vector.shape_cast %4 : vector<1x1x128xf32> to vector<1x128xf32>
    %c0_6 = arith.constant 0 : index
    %c3 = arith.constant 3 : index
    %c0_7 = arith.constant 0 : index
    %6 = vector.load %arg2[%c0_6, %c3, %c0_7] : memref<1x4x128xf32, #tpu.memory_space<vmem>>, vector<1x1x128xf32>
    %7 = vector.shape_cast %6 : vector<1x1x128xf32> to vector<1x128xf32>
    %8 = arith.subf %1, %5 : vector<1x128xf32>
    %cst = arith.constant 1.06666672 : f32
    %9 = vector.broadcast %cst : f32 to vector<1x128xf32>
    %10 = arith.mulf %8, %9 : vector<1x128xf32>
    %cst_8 = arith.constant 5.000000e-01 : f32
    %11 = vector.broadcast %cst_8 : f32 to vector<1x128xf32>
    %12 = arith.subf %10, %11 : vector<1x128xf32>
    %cst_9 = arith.constant 0.000000e+00 : f32
    %cst_10 = arith.constant 1.500000e+01 : f32
    %13 = vector.broadcast %cst_9 : f32 to vector<1x128xf32>
    %14 = arith.maximumf %13, %12 : vector<1x128xf32>
    %15 = vector.broadcast %cst_10 : f32 to vector<1x128xf32>
    %16 = arith.minimumf %15, %14 : vector<1x128xf32>
    %17 = arith.subf %3, %7 : vector<1x128xf32>
    %cst_11 = arith.constant 1.06666672 : f32
    %18 = vector.broadcast %cst_11 : f32 to vector<1x128xf32>
    %19 = arith.mulf %17, %18 : vector<1x128xf32>
    %cst_12 = arith.constant 5.000000e-01 : f32
    %20 = vector.broadcast %cst_12 : f32 to vector<1x128xf32>
    %21 = arith.subf %19, %20 : vector<1x128xf32>
    %cst_13 = arith.constant 0.000000e+00 : f32
    %cst_14 = arith.constant 1.500000e+01 : f32
    %22 = vector.broadcast %cst_13 : f32 to vector<1x128xf32>
    %23 = arith.maximumf %22, %21 : vector<1x128xf32>
    %24 = vector.broadcast %cst_14 : f32 to vector<1x128xf32>
    %25 = arith.minimumf %24, %23 : vector<1x128xf32>
    %26 = math.floor %16 : vector<1x128xf32>
    %27 = math.floor %25 : vector<1x128xf32>
    %28 = arith.subf %16, %26 : vector<1x128xf32>
    %29 = arith.subf %25, %27 : vector<1x128xf32>
    %30 = arith.fptosi %26 : vector<1x128xf32> to vector<1x128xi32>
    %c1_i32 = arith.constant 1 : i32
    %31 = vector.broadcast %c1_i32 : i32 to vector<1x128xi32>
    %32 = arith.addi %30, %31 : vector<1x128xi32>
    %c15_i32 = arith.constant 15 : i32
    %33 = vector.broadcast %c15_i32 : i32 to vector<1x128xi32>
    %34 = arith.minsi %32, %33 : vector<1x128xi32>
    %35 = arith.fptosi %27 : vector<1x128xf32> to vector<1x128xi32>
    %c1_i32_15 = arith.constant 1 : i32
    %36 = vector.broadcast %c1_i32_15 : i32 to vector<1x128xi32>
    %37 = arith.addi %35, %36 : vector<1x128xi32>
    %c15_i32_16 = arith.constant 15 : i32
    %38 = vector.broadcast %c15_i32_16 : i32 to vector<1x128xi32>
    %39 = arith.minsi %37, %38 : vector<1x128xi32>
    %40 = tpu.iota {dimensions = array<i32: 0>} : vector<16x128xi32>
    %41 = vector.broadcast %30 : vector<1x128xi32> to vector<16x128xi32>
    %42 = arith.cmpi eq, %40, %41 : vector<16x128xi32>
    %cst_17 = arith.constant 1.000000e+00 : f32
    %43 = vector.broadcast %cst_17 : f32 to vector<1x128xf32>
    %44 = arith.subf %43, %28 : vector<1x128xf32>
    %cst_18 = arith.constant 0.000000e+00 : f32
    %45 = vector.shape_cast %44 : vector<1x128xf32> to vector<1x128xf32>
    %46 = vector.broadcast %45 : vector<1x128xf32> to vector<16x128xf32>
    %47 = vector.broadcast %cst_18 : f32 to vector<16x128xf32>
    %48 = arith.select %42, %46, %47 : vector<16x128xi1>, vector<16x128xf32>
    %49 = vector.broadcast %34 : vector<1x128xi32> to vector<16x128xi32>
    %50 = arith.cmpi eq, %40, %49 : vector<16x128xi32>
    %cst_19 = arith.constant 0.000000e+00 : f32
    %51 = vector.shape_cast %28 : vector<1x128xf32> to vector<1x128xf32>
    %52 = vector.broadcast %51 : vector<1x128xf32> to vector<16x128xf32>
    %53 = vector.broadcast %cst_19 : f32 to vector<16x128xf32>
    %54 = arith.select %50, %52, %53 : vector<16x128xi1>, vector<16x128xf32>
    %55 = arith.addf %48, %54 : vector<16x128xf32>
    %56 = tpu.iota {dimensions = array<i32: 0>} : vector<16x128xi32>
    %57 = vector.broadcast %35 : vector<1x128xi32> to vector<16x128xi32>
    %58 = arith.cmpi eq, %56, %57 : vector<16x128xi32>
    %cst_20 = arith.constant 1.000000e+00 : f32
    %59 = vector.broadcast %cst_20 : f32 to vector<1x128xf32>
    %60 = arith.subf %59, %29 : vector<1x128xf32>
    %cst_21 = arith.constant 0.000000e+00 : f32
    %61 = vector.shape_cast %60 : vector<1x128xf32> to vector<1x128xf32>
    %62 = vector.broadcast %61 : vector<1x128xf32> to vector<16x128xf32>
    %63 = vector.broadcast %cst_21 : f32 to vector<16x128xf32>
    %64 = arith.select %58, %62, %63 : vector<16x128xi1>, vector<16x128xf32>
    %65 = vector.broadcast %39 : vector<1x128xi32> to vector<16x128xi32>
    %66 = arith.cmpi eq, %56, %65 : vector<16x128xi32>
    %cst_22 = arith.constant 0.000000e+00 : f32
    %67 = vector.shape_cast %29 : vector<1x128xf32> to vector<1x128xf32>
    %68 = vector.broadcast %67 : vector<1x128xf32> to vector<16x128xf32>
    %69 = vector.broadcast %cst_22 : f32 to vector<16x128xf32>
    %70 = arith.select %66, %68, %69 : vector<16x128xi1>, vector<16x128xf32>
    %71 = arith.addf %64, %70 : vector<16x128xf32>
    %c0_23 = arith.constant 0 : index
    %c0_24 = arith.constant 0 : index
    %c0_25 = arith.constant 0 : index
    %72 = vector.load %arg3[%c0_23, %c0_24, %c0_25] : memref<1x64x16xf32, #tpu.memory_space<vmem>>, vector<1x64x16xf32>
    %73 = vector.shape_cast %72 : vector<1x64x16xf32> to vector<64x16xf32>
    %cst_26 = arith.constant dense<0.000000e+00> : vector<64x128xf32>
    %74 = tpu.matmul %73, %55, %cst_26 {dimension_numbers = #tpu.dot_dimension_numbers<[1], [0], [0], [1], [0, 0, 1, 1], [], []>} : vector<64x16xf32>, vector<16x128xf32>, vector<64x128xf32> -> vector<64x128xf32>
    %75 = vector.shape_cast %74 : vector<64x128xf32> to vector<4x16x128xf32>
    %76 = vector.shape_cast %71 : vector<16x128xf32> to vector<1x16x128xf32>
    %77 = vector.broadcast %76 : vector<1x16x128xf32> to vector<4x16x128xf32>
    %78 = arith.mulf %75, %77 : vector<4x16x128xf32>
    %cst_27 = arith.constant dense<0.000000e+00> : vector<4x128xf32>
    %79 = vector.multi_reduction <add>, %78, %cst_27 [1] : vector<4x16x128xf32> to vector<4x128xf32>
    %c0_28 = arith.constant 0 : index
    %c0_29 = arith.constant 0 : index
    %c0_30 = arith.constant 0 : index
    %80 = vector.load %arg4[%c0_28, %c0_29, %c0_30] : memref<1x4x128xf32, #tpu.memory_space<vmem>>, vector<1x4x128xf32>
    %81 = vector.shape_cast %80 : vector<1x4x128xf32> to vector<4x128xf32>
    %82 = vector.shape_cast %79 : vector<4x128xf32> to vector<1x4x128xf32>
    tpu.vector_store %arg4[%c0_28, %c0_29, %c0_30], %82 {strides = array<i32>} : memref<1x4x128xf32, #tpu.memory_space<vmem>>, vector<1x4x128xf32>,
    return
  }
  func.func @transform_0(%arg0: i32, %arg1: i32) -> (i32, i32, i32) {
    %c0_i32 = arith.constant 0 : i32
    %c0_i32_0 = arith.constant 0 : i32
    return %arg0, %c0_i32, %arg1 : i32, i32, i32
  }
  func.func @transform_1(%arg0: i32, %arg1: i32) -> (i32, i32, i32) {
    %c0_i32 = arith.constant 0 : i32
    %c0_i32_0 = arith.constant 0 : i32
    %c0_i32_1 = arith.constant 0 : i32
    return %arg0, %c0_i32, %c0_i32_0 : i32, i32, i32
  }
  func.func @transform_2(%arg0: i32, %arg1: i32) -> (i32, i32, i32) {
    %c0_i32 = arith.constant 0 : i32
    %c0_i32_0 = arith.constant 0 : i32
    return %arg0, %c0_i32, %arg1 : i32, i32, i32
  }
}

</mosaic_0001>

<llo_original>
// kernel: tpu_custom_call.1
$region0: #{tpu_custom_call.1}
  #allocation0 [shape = 'u32[]', space=smem, size = 0x4, offset = 0x4, fixed_abs, tag = 'smem constant byte address 0x4 - core index']
  #allocation1 [shape = 'u32[144,128]{1,0:T(1,128)}', space=vmem, size = 0x12000, scoped, tag = 'internal scratch']
  %s0 = inlined_call_operand.vmem [shape: f32[2,4,256], index: 0, kind: input, shape index: {}]
  %s1 = inlined_call_operand.vmem [shape: f32[2,64,16], index: 1, kind: input, shape index: {}]
  %s2 = inlined_call_operand.hbm [shape: f32[2,4,256], index: 2, kind: output, shape index: {}]
  %s3 = sld [smem:[#allocation0]]
  $region41: #{tpu_custom_call.1} parent=0
    _
  %s5 = ssub.s32 1, %s3
  %s6 = scalar_select 0, %s5, %s3
  $region1: #{tpu_custom_call.1} parent=0
    #allocation2 [shape = 'u8[4096]{0}', space=vmem, size = 0x1000, scoped, tag = 'output window, operand 0']
    #allocation3 [shape = 's32[2]{0}', space=sflag, size = 0x8, scoped, tag = 'scoped memory for tpu_custom_call.1']
    %7 = vsyncpa [#allocation3], 0
    %s8 = scalar_lea.sflag [#allocation3], 1
    %9 = vsyncpa %s8, 0
    loop: start=0, step=1, limit=6
    $region2: #{tpu_custom_call.1} parent=1 // loop_pre_header
      _
    $region3: #{tpu_custom_call.1} parent=1 // loop_header
      %s11 = sphi 0, %s15
      %p12 = scmp.ge.s32.totalorder %s11, 6
      %s18 = sphi 0, %s30
      %s19 = sphi 0, %s26
      %s20 = sphi 0, %s18
      %s21 = sphi 0, %s19
      %s22 = sphi 0, %s20
      %s23 = sphi 0, %s21
      %s35 = sphi 0, %s37
      %s38 = sphi 0, %s35
      %s39 = sphi 0, %s38
      %s55 = sphi 0, %s39
      %s61 = sphi 0, %s63
      %s64 = sphi 0, %s61
      %s65 = sphi 0, %s64
      %s81 = sphi 0, %s65
      %s89 = sphi 0, %s91
      %s92 = sphi 0, %s89
      %s93 = sphi 0, %s92
      %s109 = sphi 0, %s93
    $region4: #{tpu_custom_call.1} parent=1 // loop_header_branch
      %14 = sbr.rel (%p12) target = $region8
    $region5: #{tpu_custom_call.1} parent=1 // loop_body
      %s16 = ssub.s32 %s11, 1
      %s17 = ssub.s32 %s11, 2
      %s24 = sadd.s32 1, %s19
      %p25 = scmp.ge.s32.totalorder %s24, 2
      %s26 = scalar_select %p25, 0, %s24
      %s27 = sadd.s32 1, %s18
      %s28 = scalar_select %p25, %s27, %s18
      %p29 = scmp.ge.s32.totalorder %s28, 2
      %s30 = scalar_select %p29, 0, %s28
      %s31 = ssub.s32 %s18, %s30
      %s32 = ssub.s32 %s19, %s26
      %s33 = sor.u32 %s31, %s32
      %p34 = scmp.eq.s32.totalorder %s33, 0
      %s36 = sadd.s32 %s35, 1
      %s37 = scalar_select %p34, %s35, %s36
      %p40 = pneg %p34
      %p41 = scmp.eq.s32.totalorder %s11, 3
      %p42 = por %p40, %p41
      %p43 = scmp.ne.s32.totalorder %s35, %s38
      %p44 = scmp.eq.s32.totalorder %s11, 0
      %p45 = por %p43, %p44
      %p46 = scmp.ne.s32.totalorder %s35, %s38
      %p47 = scmp.eq.s32.totalorder %s16, 3
      %p48 = por %p46, %p47
      %p49 = scmp.ne.s32.totalorder %s38, %s39
      %p50 = scmp.eq.s32.totalorder %s16, 0
      %p51 = por %p49, %p50
      %p52 = scmp.ne.s32.totalorder %s38, %s39
      %p53 = scmp.eq.s32.totalorder %s17, 3
      %p54 = por %p52, %p53
      %p56 = scmp.ne.s32.totalorder %s39, %s55
      %p57 = scmp.eq.s32.totalorder %s17, 0
      %p58 = por %p56, %p57
      %s59 = ssub.s32 %s18, %s30
      %p60 = scmp.eq.s32.totalorder %s59, 0
      %s62 = sadd.s32 %s61, 1
      %s63 = scalar_select %p60, %s61, %s62
      %p66 = pneg %p60
      %p67 = scmp.eq.s32.totalorder %s11, 3
      %p68 = por %p66, %p67
      %p69 = scmp.ne.s32.totalorder %s61, %s64
      %p70 = scmp.eq.s32.totalorder %s11, 0
      %p71 = por %p69, %p70
      %p72 = scmp.ne.s32.totalorder %s61, %s64
      %p73 = scmp.eq.s32.totalorder %s16, 3
      %p74 = por %p72, %p73
      %p75 = scmp.ne.s32.totalorder %s64, %s65
      %p76 = scmp.eq.s32.totalorder %s16, 0
      %p77 = por %p75, %p76
      %p78 = scmp.ne.s32.totalorder %s64, %s65
      %p79 = scmp.eq.s32.totalorder %s17, 3
      %p80 = por %p78, %p79
      %p82 = scmp.ne.s32.totalorder %s65, %s81
      %p83 = scmp.eq.s32.totalorder %s17, 0
      %p84 = por %p82, %p83
      %s85 = ssub.s32 %s18, %s30
      %s86 = ssub.s32 %s19, %s26
      %s87 = sor.u32 %s85, %s86
      %p88 = scmp.eq.s32.totalorder %s87, 0
      %s90 = sadd.s32 %s89, 1
      %s91 = scalar_select %p88, %s89, %s90
      %p94 = pneg %p88
      %p95 = scmp.eq.s32.totalorder %s11, 3
      %p96 = por %p94, %p95
      %p97 = scmp.ne.s32.totalorder %s89, %s92
      %p98 = scmp.eq.s32.totalorder %s11, 0
      %p99 = por %p97, %p98
      %p100 = scmp.ne.s32.totalorder %s89, %s92
      %p101 = scmp.eq.s32.totalorder %s16, 3
      %p102 = por %p100, %p101
      %p103 = scmp.ne.s32.totalorder %s92, %s93
      %p104 = scmp.eq.s32.totalorder %s16, 0
      %p105 = por %p103, %p104
      %p106 = scmp.ne.s32.totalorder %s92, %s93
      %p107 = scmp.eq.s32.totalorder %s17, 3
      %p108 = por %p106, %p107
      %p110 = scmp.ne.s32.totalorder %s93, %s109
      %p111 = scmp.eq.s32.totalorder %s17, 0
      %p112 = por %p110, %p111
      %p113 = scmp.le.s32.totalorder 1, %s11
      %p114 = scmp.lt.s32.totalorder %s11, 5
      %p115 = pnand %p113, %p114
      %p116 = pneg %p115
      // Predicated region
      $region9: #{tpu_custom_call.1} parent=5 // pred_check
        _
      $region10: #{tpu_custom_call.1} parent=5 // pred_check_branch
        %118 = sbr.rel (%p115) target = $region12
      $region11: #{tpu_custom_call.1} parent=5 // pred_region
        %s119 = ssub.s32 %s11, 1
        // Predicated region
        $region13: #{tpu_custom_call.1} parent=11 // pred_check
          %p120 = pneg %p77
        $region14: #{tpu_custom_call.1} parent=11 // pred_check_branch
          %122 = sbr.rel (%p120) target = $region16
        $region15: #{tpu_custom_call.1} parent=11 // pred_region
          %p123 = scmp.lt.s32.totalorder %s20, 1
          %s124 = scalar_select %p123, %s20, 1
          %s125 = smul.addr %s124, 8
          %s126 = smul.addr %s125, 8
          %s127 = scalar_lea.vmem %s1, %s126
        $region16: #{tpu_custom_call.1} parent=11 // pred_fallthru
          _
      $region12: #{tpu_custom_call.1} parent=5 // pred_fallthru
        _
      %p128 = scmp.lt.s32.totalorder %s11, 4
      // Predicated region
      $region17: #{tpu_custom_call.1} parent=5 // pred_check
        %p129 = pneg %p128
      $region18: #{tpu_custom_call.1} parent=5 // pred_check_branch
        %131 = sbr.rel (%p129) target = $region20
      $region19: #{tpu_custom_call.1} parent=5 // pred_region
        // Predicated region
        $region21: #{tpu_custom_call.1} parent=19 // pred_check
          %p132 = pneg %p45
        $region22: #{tpu_custom_call.1} parent=19 // pred_check_branch
          %134 = sbr.rel (%p132) target = $region24
        $region23: #{tpu_custom_call.1} parent=19 // pred_region
          %p135 = scmp.lt.s32.totalorder %s18, 1
          %s136 = scalar_select %p135, %s18, 1
          %p137 = scmp.lt.s32.totalorder %s19, 1
          %s138 = scalar_select %p137, %s19, 1
          %s139 = smul.addr %s136, 2
          %s140 = sadd.s32 %s138, %s139
          %s141 = smul.addr %s140, 4
          %s142 = scalar_lea.vmem %s0, %s141
        $region24: #{tpu_custom_call.1} parent=19 // pred_fallthru
          _
      $region20: #{tpu_custom_call.1} parent=5 // pred_fallthru
        _
      %p143 = scmp.le.s32.totalorder 1, %s11
      %p144 = scmp.lt.s32.totalorder %s11, 5
      %p145 = pnand %p143, %p144
      %p146 = pneg %p145
      // Predicated region
      $region25: #{tpu_custom_call.1} parent=5 // pred_check
        _
      $region26: #{tpu_custom_call.1} parent=5 // pred_check_branch
        %148 = sbr.rel (%p145) target = $region28
      $region27: #{tpu_custom_call.1} parent=5 // pred_region
        %s149 = ssub.s32 %s11, 1
        %p150 = scmp.lt.s32.totalorder %s20, 1
        %s151 = scalar_select %p150, %s20, 1
        %p152 = scmp.lt.s32.totalorder %s21, 1
        %s153 = scalar_select %p152, %s21, 1
        %s154 = smul.addr %s151, 2
        %s155 = sadd.s32 %s153, %s154
        %s156 = smul.addr %s155, 4
        %s157 = scalar_lea.vmem %s0, %s156
        %p158 = pneg %p51
        %p159 = pneg %p48
        %p160 = scmp.lt.s32.totalorder %s20, 1
        %s161 = scalar_select %p160, %s20, 1
        %s162 = smul.addr %s161, 8
        %s163 = smul.addr %s162, 8
        %s164 = scalar_lea.vmem %s1, %s163
        %p165 = pneg %p77
        %p166 = pneg %p74
        %p167 = pneg %p105
        %p168 = pneg %p102
        %s169 = sand.u32 %s92, 1
        %s170 = scalar_lea.sflag [#allocation3], %s169
        %s171 = sand.u32 %s92, 1
        %s172 = smul.addr %s171, 4
        %s173 = scalar_lea.vmem [#allocation2], %s172
        %p174 = scmp.lt.s32.totalorder %s20, 1
        %s175 = scalar_select %p174, %s20, 1
        %p176 = scmp.lt.s32.totalorder %s21, 1
        %s177 = scalar_select %p176, %s21, 1
        %s178 = smul.addr %s175, 2
        %s179 = sadd.s32 %s177, %s178
        %s180 = smul.addr %s179, 4
        %s181 = scalar_lea.vmem %s0, %s180
        %p182 = scmp.lt.s32.totalorder %s20, 1
        %s183 = scalar_select %p182, %s20, 1
        %s184 = smul.addr %s183, 8
        %s185 = smul.addr %s184, 8
        %s186 = scalar_lea.vmem %s1, %s185
        %v187 = vld [vmem:[%s181] sm:$0x1]
        %v188 = vld [vmem:[%s181 + $0x1] sm:$0x1]
        %v189 = vld [vmem:[%s181 + $0x2] sm:$0x1]
        %v190 = vld [vmem:[%s181 + $0x3] sm:$0x1]
        %v191 = vsub.f32 %v187, %v189
        %v192 = vmul.f32 %v191, 1.0666667
        %v193 = vsub.f32 %v192, 0.5
        %v194 = vmax.f32 %v193, 0.0
        %v195 = vmin.f32 %v194, 15.0
        %v196 = vsub.f32 %v188, %v190
        %v197 = vmul.f32 %v196, 1.0666667
        %v198 = vsub.f32 %v197, 0.5
        %v199 = vmax.f32 %v198, 0.0
        %v200 = vmin.f32 %v199, 15.0
        %v201 = vfloor.f32 %v195
        %v202 = vfloor.f32 %v200
        %v203 = vsub.f32 %v195, %v201
        %v204 = vsub.f32 %v200, %v202
        %v205 = vcvt.f32.s32.to.zero.pseudo %v201
        %v206 = vadd.s32 %v205, 1
        %vm207 = vcmp.lt.s32.totalorder %v206, 15
        %v208 = vsel %vm207, %v206, 15
        %v209 = vcvt.f32.s32.to.zero.pseudo %v202
        %v210 = vadd.s32 %v209, 1
        %vm211 = vcmp.lt.s32.totalorder %v210, 15
        %v212 = vsel %vm211, %v210, 15
        %v213 = vlaneseq
        %v214 = vshrl.u32 %v213, 7
        %v215 = vadd.s32 %v214, 8
        %v216 = vlaneseq
        %v217 = vshrl.u32 %v216, 7
        %v218 = vsub.s32 0, %v217
        %v219 = vrot.slane %v205, %v218
        %vm220 = vcmp.eq.s32.totalorder %v214, %v219
        %vm221 = vcmp.eq.s32.totalorder %v215, %v219
        %v222 = vsub.f32 1.0, %v203
        %v223 = vlaneseq
        %v224 = vshrl.u32 %v223, 7
        %v225 = vsub.s32 0, %v224
        %v226 = vrot.slane %v222, %v225
        %v227 = vsel %vm220, %v226, 0.0
        %v228 = vsel %vm221, %v226, 0.0
        %v229 = vlaneseq
        %v230 = vshrl.u32 %v229, 7
        %v231 = vsub.s32 0, %v230
        %v232 = vrot.slane %v208, %v231
        %vm233 = vcmp.eq.s32.totalorder %v214, %v232
        %vm234 = vcmp.eq.s32.totalorder %v215, %v232
        %v235 = vlaneseq
        %v236 = vshrl.u32 %v235, 7
        %v237 = vsub.s32 0, %v236
        %v238 = vrot.slane %v203, %v237
        %v239 = vsel %vm233, %v238, 0.0
        %v240 = vsel %vm234, %v238, 0.0
        %v241 = vadd.f32 %v227, %v239
        %v242 = vadd.f32 %v228, %v240
        %v243 = vlaneseq
        %v244 = vshrl.u32 %v243, 7
        %v245 = vsub.s32 0, %v244
        %v246 = vrot.slane %v209, %v245
        %vm247 = vcmp.eq.s32.totalorder %v214, %v246
        %vm248 = vcmp.eq.s32.totalorder %v215, %v246
        %v249 = vsub.f32 1.0, %v204
        %v250 = vlaneseq
        %v251 = vshrl.u32 %v250, 7
        %v252 = vsub.s32 0, %v251
        %v253 = vrot.slane %v249, %v252
        %v254 = vsel %vm247, %v253, 0.0
        %v255 = vsel %vm248, %v253, 0.0
        %v256 = vlaneseq
        %v257 = vshrl.u32 %v256, 7
        %v258 = vsub.s32 0, %v257
        %v259 = vrot.slane %v212, %v258
        %vm260 = vcmp.eq.s32.totalorder %v214, %v259
        %vm261 = vcmp.eq.s32.totalorder %v215, %v259
        %v262 = vlaneseq
        %v263 = vshrl.u32 %v262, 7
        %v264 = vsub.s32 0, %v263
        %v265 = vrot.slane %v204, %v264
        %v266 = vsel %vm260, %v265, 0.0
        %v267 = vsel %vm261, %v265, 0.0
        %v268 = vadd.f32 %v254, %v266
        %v269 = vadd.f32 %v255, %v267
        %v270 = vld [vmem:[%s186] sm:$0xff]
        %v271 = vld [vmem:[%s186 + $0x8] sm:$0xff]
        %v272 = vld [vmem:[%s186 + $0x10] sm:$0xff]
        %v273 = vld [vmem:[%s186 + $0x18] sm:$0xff]
        %v274 = vld [vmem:[%s186 + $0x20] sm:$0xff]
        %v275 = vld [vmem:[%s186 + $0x28] sm:$0xff]
        %v276 = vld [vmem:[%s186 + $0x30] sm:$0xff]
        %v277 = vld [vmem:[%s186 + $0x38] sm:$0xff]
        %vm278 = vcmask 130048
        %v280 = vsel %vm278, %v270, 0
        %v283 = vsel %vm278, %v271, 0
        %v286 = vsel %vm278, %v272, 0
        %v289 = vsel %vm278, %v273, 0
        %v292 = vsel %vm278, %v274, 0
        %v295 = vsel %vm278, %v275, 0
        %v298 = vsel %vm278, %v276, 0
        %v301 = vsel %vm278, %v277, 0
        %303 = vmatprep.subr.mxu0 0.0
        %304 = vmatpush1.msra.mxu0 %v241
        %305 = vmatprep.subr.mxu0 0.0
        %306 = vmatpush1.msra.mxu0 %v242
        %307 = vmatprep.subr.mxu0 0.0
        %308 = vmatpush1.msra.mxu0 0.0
        %309 = vmatprep.subr.mxu0 0.0
        %310 = vmatpush1.msra.mxu0 0.0
        %311 = vmatprep.subr.mxu0 0.0
        %312 = vmatpush1.msra.mxu0 0.0
        %313 = vmatprep.subr.mxu0 0.0
        %314 = vmatpush1.msra.mxu0 0.0
        %315 = vmatprep.subr.mxu0 0.0
        %316 = vmatpush1.msra.mxu0 0.0
        %317 = vmatprep.subr.mxu0 0.0
        %318 = vmatpush1.msra.mxu0 0.0
        %319 = vmatprep.subr.mxu0 0.0
        %320 = vmatpush1.msra.mxu0 0.0
        %321 = vmatprep.subr.mxu0 0.0
        %322 = vmatpush1.msra.mxu0 0.0
        %323 = vmatprep.subr.mxu0 0.0
        %324 = vmatpush1.msra.mxu0 0.0
        %325 = vmatprep.subr.mxu0 0.0
        %326 = vmatpush1.msra.mxu0 0.0
        %327 = vmatprep.subr.mxu0 0.0
        %328 = vmatpush1.msra.mxu0 0.0
        %329 = vmatprep.subr.mxu0 0.0
        %330 = vmatpush1.msra.mxu0 0.0
        %331 = vmatprep.subr.mxu0 0.0
        %332 = vmatpush1.msra.mxu0 0.0
        %333 = vmatprep.subr.mxu0 0.0
        %334 = vmatpush1.msra.mxu0 0.0
        %335 = vmatprep.subr.mxu0 0.0
        %336 = vmatpush1.msra.mxu0 0.0
        %337 = vmatprep.subr.mxu0 0.0
        %338 = vmatpush1.msra.mxu0 0.0
        %339 = vmatprep.subr.mxu0 0.0
        %340 = vmatpush1.msra.mxu0 0.0
        %341 = vmatprep.subr.mxu0 0.0
        %342 = vmatpush1.msra.mxu0 0.0
        %343 = vmatprep.subr.mxu0 0.0
        %344 = vmatpush1.msra.mxu0 0.0
        %345 = vmatprep.subr.mxu0 0.0
        %346 = vmatpush1.msra.mxu0 0.0
        %347 = vmatprep.subr.mxu0 0.0
        %348 = vmatpush1.msra.mxu0 0.0
        %349 = vmatprep.subr.mxu0 0.0
        %350 = vmatpush1.msra.mxu0 0.0
        %351 = vmatprep.subr.mxu0 0.0
        %352 = vmatpush1.msra.mxu0 0.0
        %353 = vmatprep.subr.mxu0 0.0
        %354 = vmatpush1.msra.mxu0 0.0
        %355 = vmatprep.subr.mxu0 0.0
        %356 = vmatpush1.msra.mxu0 0.0
        %357 = vmatprep.subr.mxu0 0.0
        %358 = vmatpush1.msra.mxu0 0.0
        %359 = vmatprep.subr.mxu0 0.0
        %360 = vmatpush1.msra.mxu0 0.0
        %361 = vmatprep.subr.mxu0 0.0
        %362 = vmatpush1.msra.mxu0 0.0
        %363 = vmatprep.subr.mxu0 0.0
        %364 = vmatpush1.msra.mxu0 0.0
        %365 = vmatprep.subr.mxu0 0.0
        %366 = vmatpush1.msra.mxu0 0.0
        %367 = vmatprep.mubr.f32.mxu0 0.0
        %368 = vmatmul.mubr.f32.gmra.mrb[0].mxu0 %v280
        %v369 = vpop.f32.mrb[0].mxu0
        %v370 = vadd.f32 0.0, %v369
        %v371 = vpop.f32.mrb[0].mxu0
        %372 = vmatprep.mubr.f32.mxu0 0.0
        %373 = vmatmul.mubr.f32.gmra.mrb[0].mxu0 %v283
        %v374 = vpop.f32.mrb[0].mxu0
        %v375 = vadd.f32 0.0, %v374
        %v376 = vpop.f32.mrb[0].mxu0
        %377 = vmatprep.mubr.f32.mxu0 0.0
        %378 = vmatmul.mubr.f32.gmra.mrb[0].mxu0 %v286
        %v379 = vpop.f32.mrb[0].mxu0
        %v380 = vadd.f32 0.0, %v379
        %v381 = vpop.f32.mrb[0].mxu0
        %382 = vmatprep.mubr.f32.mxu0 0.0
        %383 = vmatmul.mubr.f32.gmra.mrb[0].mxu0 %v289
        %v384 = vpop.f32.mrb[0].mxu0
        %v385 = vadd.f32 0.0, %v384
        %v386 = vpop.f32.mrb[0].mxu0
        %387 = vmatprep.mubr.f32.mxu0 0.0
        %388 = vmatmul.mubr.f32.gmra.mrb[0].mxu0 %v292
        %v389 = vpop.f32.mrb[0].mxu0
        %v390 = vadd.f32 0.0, %v389
        %v391 = vpop.f32.mrb[0].mxu0
        %392 = vmatprep.mubr.f32.mxu0 0.0
        %393 = vmatmul.mubr.f32.gmra.mrb[0].mxu0 %v295
        %v394 = vpop.f32.mrb[0].mxu0
        %v395 = vadd.f32 0.0, %v394
        %v396 = vpop.f32.mrb[0].mxu0
        %397 = vmatprep.mubr.f32.mxu0 0.0
        %398 = vmatmul.mubr.f32.gmra.mrb[0].mxu0 %v298
        %v399 = vpop.f32.mrb[0].mxu0
        %v400 = vadd.f32 0.0, %v399
        %v401 = vpop.f32.mrb[0].mxu0
        %402 = vmatprep.mubr.f32.mxu0 0.0
        %403 = vmatmul.mubr.f32.gmra.mrb[0].mxu0 %v301
        %v404 = vpop.f32.mrb[0].mxu0
        %v405 = vadd.f32 0.0, %v404
        %v406 = vpop.f32.mrb[0].mxu0
        %407 = vdwg.mxu0
        %v408 = vmul.f32 %v370, %v268
        %v409 = vmul.f32 %v375, %v269
        %v410 = vmul.f32 %v380, %v268
        %v411 = vmul.f32 %v385, %v269
        %v412 = vmul.f32 %v390, %v268
        %v413 = vmul.f32 %v395, %v269
        %v414 = vmul.f32 %v400, %v268
        %v415 = vmul.f32 %v405, %v269
        %v416 = vadd.f32 %v408, %v409
        %v417 = vrot.slane %v416, 4
        %v418 = vadd.f32 %v416, %v417
        %v419 = vrot.slane %v418, 2
        %v420 = vadd.f32 %v418, %v419
        %v421 = vrot.slane %v420, 1
        %v422 = vadd.f32 %v420, %v421
        %v423 = vadd.f32 %v410, %v411
        %v424 = vrot.slane %v423, 4
        %v425 = vadd.f32 %v423, %v424
        %v426 = vrot.slane %v425, 2
        %v427 = vadd.f32 %v425, %v426
        %v428 = vrot.slane %v427, 1
        %v429 = vadd.f32 %v427, %v428
        %v430 = vadd.f32 %v412, %v413
        %v431 = vrot.slane %v430, 4
        %v432 = vadd.f32 %v430, %v431
        %v433 = vrot.slane %v432, 2
        %v434 = vadd.f32 %v432, %v433
        %v435 = vrot.slane %v434, 1
        %v436 = vadd.f32 %v434, %v435
        %v437 = vadd.f32 %v414, %v415
        %v438 = vrot.slane %v437, 4
        %v439 = vadd.f32 %v437, %v438
        %v440 = vrot.slane %v439, 2
        %v441 = vadd.f32 %v439, %v440
        %v442 = vrot.slane %v441, 1
        %v443 = vadd.f32 %v441, %v442
        %vm448 = vcmask 1041409
        %v449 = vsel %vm448, %v429, %v422
        %vm450 = vcmask 1042434
        %v451 = vsel %vm450, %v436, %v449
        %vm452 = vcmask 1043459
        %v453 = vsel %vm452, %v443, %v451
        %455 = vst [vmem:[%s173] sm:$0xf] %v453
        %s456 = sand.u32 %s92, 1
        %s457 = scalar_lea.sflag [#allocation3], %s456
        %s458 = sand.u32 %s92, 1
        %s459 = smul.addr %s458, 4
        %s460 = scalar_lea.vmem [#allocation2], %s459
        // Predicated region
        $region29: #{tpu_custom_call.1} parent=27 // pred_check
          %p461 = pneg %p102
        $region30: #{tpu_custom_call.1} parent=27 // pred_check_branch
          %463 = sbr.rel (%p461) target = $region32
        $region31: #{tpu_custom_call.1} parent=27 // pred_region
          %s465 = ssub.s32 64, 64
          %466 = vsyncadd %s457, %s465
          %s467 = smul.addr %s20, 2
          %s468 = sadd.s32 %s21, %s467
          %s469 = smul.addr %s468, 64
          %s470 = scalar_lea.hbm %s2, %s469
          %s472 = sshll.u32 %s460, 4
          %s473 = int_to_ptr.vmem [resolvable:$true] %s472
          %475 = dma.vmem_to_hbm [thread:$0]  %s473, 64, %s470, %s457
        $region32: #{tpu_custom_call.1} parent=27 // pred_fallthru
          _
      $region28: #{tpu_custom_call.1} parent=5 // pred_fallthru
        _
      %p476 = scmp.le.s32.totalorder 2, %s11
      // Predicated region
      $region33: #{tpu_custom_call.1} parent=5 // pred_check
        %p477 = pneg %p476
      $region34: #{tpu_custom_call.1} parent=5 // pred_check_branch
        %479 = sbr.rel (%p477) target = $region36
      $region35: #{tpu_custom_call.1} parent=5 // pred_region
        %s480 = ssub.s32 %s11, 2
        // Predicated region
        $region37: #{tpu_custom_call.1} parent=35 // pred_check
          %p481 = pneg %p108
        $region38: #{tpu_custom_call.1} parent=35 // pred_check_branch
          %483 = sbr.rel (%p481) target = $region40
        $region39: #{tpu_custom_call.1} parent=35 // pred_region
          %s484 = sand.u32 %s93, 1
          %s485 = scalar_lea.sflag [#allocation3], %s484
          %s486 = sand.u32 %s93, 1
          %s487 = smul.addr %s486, 4
          %s488 = scalar_lea.vmem [#allocation2], %s487
          %489 = dma.done %s485, 64
        $region40: #{tpu_custom_call.1} parent=35 // pred_fallthru
          _
      $region36: #{tpu_custom_call.1} parent=5 // pred_fallthru
        _
    $region6: #{tpu_custom_call.1} parent=1 // loop_footer
      %s15 = sadd.s32 1, %s11
    $region7: #{tpu_custom_call.1} parent=1 // loop_footer_branch
      %10 = sbr.rel target = $region3
    $region8: #{tpu_custom_call.1} parent=1 // loop_exit
      _
    %490 = vsyncpa [#allocation3], 1
    %s491 = scalar_lea.sflag [#allocation3], 1
    %492 = vsyncpa %s491, 1

// kernel: tpu_custom_call.1
$region0: #{tpu_custom_call.1}
  #allocation0 [shape = 'u32[]', space=smem, size = 0x4, offset = 0x4, fixed_abs, tag = 'smem constant byte address 0x4 - core index']
  #allocation1 [shape = 'u32[144,128]{1,0:T(1,128)}', space=vmem, size = 0x12000, scoped, tag = 'internal scratch']
  %s0 = inlined_call_operand.vmem [shape: f32[2,4,256], index: 0, kind: input, shape index: {}]
  %s1 = inlined_call_operand.vmem [shape: f32[2,64,16], index: 1, kind: input, shape index: {}]
  %s2 = inlined_call_operand.hbm [shape: f32[2,4,256], index: 2, kind: output, shape index: {}]
  %s3 = sld [smem:[#allocation0]]
  $region41: #{tpu_custom_call.1} parent=0
    _
  %s5 = ssub.s32 1, %s3
  %s6 = scalar_select 0, %s5, %s3
  $region1: #{tpu_custom_call.1} parent=0
    #allocation2 [shape = 'u8[4096]{0}', space=vmem, size = 0x1000, scoped, tag = 'output window, operand 0']
    #allocation3 [shape = 's32[2]{0}', space=sflag, size = 0x8, scoped, tag = 'scoped memory for tpu_custom_call.1']
    %7 = vsyncpa [#allocation3], 0
    %s8 = scalar_lea.sflag [#allocation3], 1
    %9 = vsyncpa %s8, 0
    loop: start=0, step=1, limit=6
    $region2: #{tpu_custom_call.1} parent=1 // loop_pre_header
      _
    $region3: #{tpu_custom_call.1} parent=1 // loop_header
      %s11 = sphi 0, %s15
      %p12 = scmp.ge.s32.totalorder %s11, 6
      %s18 = sphi 0, %s30
      %s19 = sphi 0, %s26
      %s20 = sphi 0, %s18
      %s21 = sphi 0, %s19
      %s22 = sphi 0, %s20
      %s23 = sphi 0, %s21
      %s35 = sphi 0, %s37
      %s38 = sphi 0, %s35
      %s39 = sphi 0, %s38
      %s55 = sphi 0, %s39
      %s61 = sphi 0, %s63
      %s64 = sphi 0, %s61
      %s65 = sphi 0, %s64
      %s81 = sphi 0, %s65
      %s89 = sphi 0, %s91
      %s92 = sphi 0, %s89
      %s93 = sphi 0, %s92
      %s109 = sphi 0, %s93
    $region4: #{tpu_custom_call.1} parent=1 // loop_header_branch
      %14 = sbr.rel (%p12) target = $region8
    $region5: #{tpu_custom_call.1} parent=1 // loop_body
      %s16 = ssub.s32 %s11, 1
      %s17 = ssub.s32 %s11, 2
      %s24 = sadd.s32 1, %s19
      %p25 = scmp.ge.s32.totalorder %s24, 2
      %s26 = scalar_select %p25, 0, %s24
      %s27 = sadd.s32 1, %s18
      %s28 = scalar_select %p25, %s27, %s18
      %p29 = scmp.ge.s32.totalorder %s28, 2
      %s30 = scalar_select %p29, 0, %s28
      %s31 = ssub.s32 %s18, %s30
      %s32 = ssub.s32 %s19, %s26
      %s33 = sor.u32 %s31, %s32
      %p34 = scmp.eq.s32.totalorder %s33, 0
      %s36 = sadd.s32 %s35, 1
      %s37 = scalar_select %p34, %s35, %s36
      %p40 = pneg %p34
      %p41 = scmp.eq.s32.totalorder %s11, 3
      %p42 = por %p40, %p41
      %p43 = scmp.ne.s32.totalorder %s35, %s38
      %p44 = scmp.eq.s32.totalorder %s11, 0
      %p45 = por %p43, %p44
      %p46 = scmp.ne.s32.totalorder %s35, %s38
      %p47 = scmp.eq.s32.totalorder %s16, 3
      %p48 = por %p46, %p47
      %p49 = scmp.ne.s32.totalorder %s38, %s39
      %p50 = scmp.eq.s32.totalorder %s16, 0
      %p51 = por %p49, %p50
      %p52 = scmp.ne.s32.totalorder %s38, %s39
      %p53 = scmp.eq.s32.totalorder %s17, 3
      %p54 = por %p52, %p53
      %p56 = scmp.ne.s32.totalorder %s39, %s55
      %p57 = scmp.eq.s32.totalorder %s17, 0
      %p58 = por %p56, %p57
      %s59 = ssub.s32 %s18, %s30
      %p60 = scmp.eq.s32.totalorder %s59, 0
      %s62 = sadd.s32 %s61, 1
      %s63 = scalar_select %p60, %s61, %s62
      %p66 = pneg %p60
      %p67 = scmp.eq.s32.totalorder %s11, 3
      %p68 = por %p66, %p67
      %p69 = scmp.ne.s32.totalorder %s61, %s64
      %p70 = scmp.eq.s32.totalorder %s11, 0
      %p71 = por %p69, %p70
      %p72 = scmp.ne.s32.totalorder %s61, %s64
      %p73 = scmp.eq.s32.totalorder %s16, 3
      %p74 = por %p72, %p73
      %p75 = scmp.ne.s32.totalorder %s64, %s65
      %p76 = scmp.eq.s32.totalorder %s16, 0
      %p77 = por %p75, %p76
      %p78 = scmp.ne.s32.totalorder %s64, %s65
      %p79 = scmp.eq.s32.totalorder %s17, 3
      %p80 = por %p78, %p79
      %p82 = scmp.ne.s32.totalorder %s65, %s81
      %p83 = scmp.eq.s32.totalorder %s17, 0
      %p84 = por %p82, %p83
      %s85 = ssub.s32 %s18, %s30
      %s86 = ssub.s32 %s19, %s26
      %s87 = sor.u32 %s85, %s86
      %p88 = scmp.eq.s32.totalorder %s87, 0
      %s90 = sadd.s32 %s89, 1
      %s91 = scalar_select %p88, %s89, %s90
      %p94 = pneg %p88
      %p95 = scmp.eq.s32.totalorder %s11, 3
      %p96 = por %p94, %p95
      %p97 = scmp.ne.s32.totalorder %s89, %s92
      %p98 = scmp.eq.s32.totalorder %s11, 0
      %p99 = por %p97, %p98
      %p100 = scmp.ne.s32.totalorder %s89, %s92
      %p101 = scmp.eq.s32.totalorder %s16, 3
      %p102 = por %p100, %p101
      %p103 = scmp.ne.s32.totalorder %s92, %s93
      %p104 = scmp.eq.s32.totalorder %s16, 0
      %p105 = por %p103, %p104
      %p106 = scmp.ne.s32.totalorder %s92, %s93
      %p107 = scmp.eq.s32.totalorder %s17, 3
      %p108 = por %p106, %p107
      %p110 = scmp.ne.s32.totalorder %s93, %s109
      %p111 = scmp.eq.s32.totalorder %s17, 0
      %p112 = por %p110, %p111
      %p113 = scmp.le.s32.totalorder 1, %s11
      %p114 = scmp.lt.s32.totalorder %s11, 5
      %p115 = pnand %p113, %p114
      %p116 = pneg %p115
      // Predicated region
      $region9: #{tpu_custom_call.1} parent=5 // pred_check
        _
      $region10: #{tpu_custom_call.1} parent=5 // pred_check_branch
        %118 = sbr.rel (%p115) target = $region12
      $region11: #{tpu_custom_call.1} parent=5 // pred_region
        %s119 = ssub.s32 %s11, 1
      $region12: #{tpu_custom_call.1} parent=5 // pred_fallthru
        _
      %p120 = scmp.lt.s32.totalorder %s11, 4
      // Predicated region
      $region13: #{tpu_custom_call.1} parent=5 // pred_check
        %p121 = pneg %p120
      $region14: #{tpu_custom_call.1} parent=5 // pred_check_branch
        %123 = sbr.rel (%p121) target = $region16
      $region15: #{tpu_custom_call.1} parent=5 // pred_region
        // Predicated region
        $region17: #{tpu_custom_call.1} parent=15 // pred_check
          %p124 = pneg %p45
        $region18: #{tpu_custom_call.1} parent=15 // pred_check_branch
          %126 = sbr.rel (%p124) target = $region20
        $region19: #{tpu_custom_call.1} parent=15 // pred_region
          %p127 = scmp.lt.s32.totalorder %s18, 1
          %s128 = scalar_select %p127, %s18, 1
          %p129 = scmp.lt.s32.totalorder %s19, 1
          %s130 = scalar_select %p129, %s19, 1
          %s131 = smul.addr %s128, 2
          %s132 = sadd.s32 %s130, %s131
          %s133 = smul.addr %s132, 4
          %s134 = scalar_lea.vmem %s0, %s133
        $region20: #{tpu_custom_call.1} parent=15 // pred_fallthru
          _
        // Predicated region
        $region21: #{tpu_custom_call.1} parent=15 // pred_check
          %p135 = pneg %p71
        $region22: #{tpu_custom_call.1} parent=15 // pred_check_branch
          %137 = sbr.rel (%p135) target = $region24
        $region23: #{tpu_custom_call.1} parent=15 // pred_region
          %p138 = scmp.lt.s32.totalorder %s18, 1
          %s139 = scalar_select %p138, %s18, 1
          %s140 = smul.addr %s139, 8
          %s141 = smul.addr %s140, 8
          %s142 = scalar_lea.vmem %s1, %s141
        $region24: #{tpu_custom_call.1} parent=15 // pred_fallthru
          _
      $region16: #{tpu_custom_call.1} parent=5 // pred_fallthru
        _
      %p143 = scmp.le.s32.totalorder 1, %s11
      %p144 = scmp.lt.s32.totalorder %s11, 5
      %p145 = pnand %p143, %p144
      %p146 = pneg %p145
      // Predicated region
      $region25: #{tpu_custom_call.1} parent=5 // pred_check
        _
      $region26: #{tpu_custom_call.1} parent=5 // pred_check_branch
        %148 = sbr.rel (%p145) target = $region28
      $region27: #{tpu_custom_call.1} parent=5 // pred_region
        %s149 = ssub.s32 %s11, 1
        %p150 = scmp.lt.s32.totalorder %s20, 1
        %s151 = scalar_select %p150, %s20, 1
        %p152 = scmp.lt.s32.totalorder %s21, 1
        %s153 = scalar_select %p152, %s21, 1
        %s154 = smul.addr %s151, 2
        %s155 = sadd.s32 %s153, %s154
        %s156 = smul.addr %s155, 4
        %s157 = scalar_lea.vmem %s0, %s156
        %p158 = pneg %p51
        %p159 = pneg %p48
        %p160 = scmp.lt.s32.totalorder %s20, 1
        %s161 = scalar_select %p160, %s20, 1
        %s162 = smul.addr %s161, 8
        %s163 = smul.addr %s162, 8
        %s164 = scalar_lea.vmem %s1, %s163
        %p165 = pneg %p77
        %p166 = pneg %p74
        %p167 = pneg %p105
        %p168 = pneg %p102
        %s169 = sand.u32 %s92, 1
        %s170 = scalar_lea.sflag [#allocation3], %s169
        %s171 = sand.u32 %s92, 1
        %s172 = smul.addr %s171, 4
        %s173 = scalar_lea.vmem [#allocation2], %s172
        %p174 = scmp.lt.s32.totalorder %s20, 1
        %s175 = scalar_select %p174, %s20, 1
        %p176 = scmp.lt.s32.totalorder %s21, 1
        %s177 = scalar_select %p176, %s21, 1
        %s178 = smul.addr %s175, 2
        %s179 = sadd.s32 %s177, %s178
        %s180 = smul.addr %s179, 4
        %s181 = scalar_lea.vmem %s0, %s180
        %p182 = scmp.lt.s32.totalorder %s20, 1
        %s183 = scalar_select %p182, %s20, 1
        %s184 = smul.addr %s183, 8
        %s185 = smul.addr %s184, 8
        %s186 = scalar_lea.vmem %s1, %s185
        %v187 = vld [vmem:[%s181] sm:$0x1]
        %v188 = vld [vmem:[%s181 + $0x1] sm:$0x1]
        %v189 = vld [vmem:[%s181 + $0x2] sm:$0x1]
        %v190 = vld [vmem:[%s181 + $0x3] sm:$0x1]
        %v191 = vsub.f32 %v187, %v189
        %v192 = vmul.f32 %v191, 1.0666667
        %v193 = vsub.f32 %v192, 0.5
        %v194 = vmax.f32 %v193, 0.0
        %v195 = vmin.f32 %v194, 15.0
        %v196 = vsub.f32 %v188, %v190
        %v197 = vmul.f32 %v196, 1.0666667
        %v198 = vsub.f32 %v197, 0.5
        %v199 = vmax.f32 %v198, 0.0
        %v200 = vmin.f32 %v199, 15.0
        %v201 = vfloor.f32 %v195
        %v202 = vfloor.f32 %v200
        %v203 = vsub.f32 %v195, %v201
        %v204 = vsub.f32 %v200, %v202
        %v205 = vcvt.f32.s32.to.zero.pseudo %v201
        %v206 = vadd.s32 %v205, 1
        %vm207 = vcmp.lt.s32.totalorder %v206, 15
        %v208 = vsel %vm207, %v206, 15
        %v209 = vcvt.f32.s32.to.zero.pseudo %v202
        %v210 = vadd.s32 %v209, 1
        %vm211 = vcmp.lt.s32.totalorder %v210, 15
        %v212 = vsel %vm211, %v210, 15
        %v213 = vlaneseq
        %v214 = vshrl.u32 %v213, 7
        %v215 = vadd.s32 %v214, 8
        %v216 = vlaneseq
        %v217 = vshrl.u32 %v216, 7
        %v218 = vsub.s32 0, %v217
        %v219 = vrot.slane %v205, %v218
        %vm220 = vcmp.eq.s32.totalorder %v214, %v219
        %vm221 = vcmp.eq.s32.totalorder %v215, %v219
        %v222 = vsub.f32 1.0, %v203
        %v223 = vlaneseq
        %v224 = vshrl.u32 %v223, 7
        %v225 = vsub.s32 0, %v224
        %v226 = vrot.slane %v222, %v225
        %v227 = vsel %vm220, %v226, 0.0
        %v228 = vsel %vm221, %v226, 0.0
        %v229 = vlaneseq
        %v230 = vshrl.u32 %v229, 7
        %v231 = vsub.s32 0, %v230
        %v232 = vrot.slane %v208, %v231
        %vm233 = vcmp.eq.s32.totalorder %v214, %v232
        %vm234 = vcmp.eq.s32.totalorder %v215, %v232
        %v235 = vlaneseq
        %v236 = vshrl.u32 %v235, 7
        %v237 = vsub.s32 0, %v236
        %v238 = vrot.slane %v203, %v237
        %v239 = vsel %vm233, %v238, 0.0
        %v240 = vsel %vm234, %v238, 0.0
        %v241 = vadd.f32 %v227, %v239
        %v242 = vadd.f32 %v228, %v240
        %v243 = vlaneseq
        %v244 = vshrl.u32 %v243, 7
        %v245 = vsub.s32 0, %v244
        %v246 = vrot.slane %v209, %v245
        %vm247 = vcmp.eq.s32.totalorder %v214, %v246
        %vm248 = vcmp.eq.s32.totalorder %v215, %v246
        %v249 = vsub.f32 1.0, %v204
        %v250 = vlaneseq
        %v251 = vshrl.u32 %v250, 7
        %v252 = vsub.s32 0, %v251
        %v253 = vrot.slane %v249, %v252
        %v254 = vsel %vm247, %v253, 0.0
        %v255 = vsel %vm248, %v253, 0.0
        %v256 = vlaneseq
        %v257 = vshrl.u32 %v256, 7
        %v258 = vsub.s32 0, %v257
        %v259 = vrot.slane %v212, %v258
        %vm260 = vcmp.eq.s32.totalorder %v214, %v259
        %vm261 = vcmp.eq.s32.totalorder %v215, %v259
        %v262 = vlaneseq
        %v263 = vshrl.u32 %v262, 7
        %v264 = vsub.s32 0, %v263
        %v265 = vrot.slane %v204, %v264
        %v266 = vsel %vm260, %v265, 0.0
        %v267 = vsel %vm261, %v265, 0.0
        %v268 = vadd.f32 %v254, %v266
        %v269 = vadd.f32 %v255, %v267
        %v270 = vld [vmem:[%s186] sm:$0xff]
        %v271 = vld [vmem:[%s186 + $0x8] sm:$0xff]
        %v272 = vld [vmem:[%s186 + $0x10] sm:$0xff]
        %v273 = vld [vmem:[%s186 + $0x18] sm:$0xff]
        %v274 = vld [vmem:[%s186 + $0x20] sm:$0xff]
        %v275 = vld [vmem:[%s186 + $0x28] sm:$0xff]
        %v276 = vld [vmem:[%s186 + $0x30] sm:$0xff]
        %v277 = vld [vmem:[%s186 + $0x38] sm:$0xff]
        %vm278 = vcmask 130048
        %v280 = vsel %vm278, %v270, 0
        %v283 = vsel %vm278, %v271, 0
        %v286 = vsel %vm278, %v272, 0
        %v289 = vsel %vm278, %v273, 0
        %v292 = vsel %vm278, %v274, 0
        %v295 = vsel %vm278, %v275, 0
        %v298 = vsel %vm278, %v276, 0
        %v301 = vsel %vm278, %v277, 0
        %303 = vmatprep.subr.mxu0 0.0
        %304 = vmatpush1.msra.mxu0 %v241
        %305 = vmatprep.subr.mxu0 0.0
        %306 = vmatpush1.msra.mxu0 %v242
        %307 = vmatprep.subr.mxu0 0.0
        %308 = vmatpush1.msra.mxu0 0.0
        %309 = vmatprep.subr.mxu0 0.0
        %310 = vmatpush1.msra.mxu0 0.0
        %311 = vmatprep.subr.mxu0 0.0
        %312 = vmatpush1.msra.mxu0 0.0
        %313 = vmatprep.subr.mxu0 0.0
        %314 = vmatpush1.msra.mxu0 0.0
        %315 = vmatprep.subr.mxu0 0.0
        %316 = vmatpush1.msra.mxu0 0.0
        %317 = vmatprep.subr.mxu0 0.0
        %318 = vmatpush1.msra.mxu0 0.0
        %319 = vmatprep.subr.mxu0 0.0
        %320 = vmatpush1.msra.mxu0 0.0
        %321 = vmatprep.subr.mxu0 0.0
        %322 = vmatpush1.msra.mxu0 0.0
        %323 = vmatprep.subr.mxu0 0.0
        %324 = vmatpush1.msra.mxu0 0.0
        %325 = vmatprep.subr.mxu0 0.0
        %326 = vmatpush1.msra.mxu0 0.0
        %327 = vmatprep.subr.mxu0 0.0
        %328 = vmatpush1.msra.mxu0 0.0
        %329 = vmatprep.subr.mxu0 0.0
        %330 = vmatpush1.msra.mxu0 0.0
        %331 = vmatprep.subr.mxu0 0.0
        %332 = vmatpush1.msra.mxu0 0.0
        %333 = vmatprep.subr.mxu0 0.0
        %334 = vmatpush1.msra.mxu0 0.0
        %335 = vmatprep.subr.mxu0 0.0
        %336 = vmatpush1.msra.mxu0 0.0
        %337 = vmatprep.subr.mxu0 0.0
        %338 = vmatpush1.msra.mxu0 0.0
        %339 = vmatprep.subr.mxu0 0.0
        %340 = vmatpush1.msra.mxu0 0.0
        %341 = vmatprep.subr.mxu0 0.0
        %342 = vmatpush1.msra.mxu0 0.0
        %343 = vmatprep.subr.mxu0 0.0
        %344 = vmatpush1.msra.mxu0 0.0
        %345 = vmatprep.subr.mxu0 0.0
        %346 = vmatpush1.msra.mxu0 0.0
        %347 = vmatprep.subr.mxu0 0.0
        %348 = vmatpush1.msra.mxu0 0.0
        %349 = vmatprep.subr.mxu0 0.0
        %350 = vmatpush1.msra.mxu0 0.0
        %351 = vmatprep.subr.mxu0 0.0
        %352 = vmatpush1.msra.mxu0 0.0
        %353 = vmatprep.subr.mxu0 0.0
        %354 = vmatpush1.msra.mxu0 0.0
        %355 = vmatprep.subr.mxu0 0.0
        %356 = vmatpush1.msra.mxu0 0.0
        %357 = vmatprep.subr.mxu0 0.0
        %358 = vmatpush1.msra.mxu0 0.0
        %359 = vmatprep.subr.mxu0 0.0
        %360 = vmatpush1.msra.mxu0 0.0
        %361 = vmatprep.subr.mxu0 0.0
        %362 = vmatpush1.msra.mxu0 0.0
        %363 = vmatprep.subr.mxu0 0.0
        %364 = vmatpush1.msra.mxu0 0.0
        %365 = vmatprep.subr.mxu0 0.0
        %366 = vmatpush1.msra.mxu0 0.0
        %367 = vmatprep.mubr.f32.mxu0 0.0
        %368 = vmatmul.mubr.f32.gmra.mrb[0].mxu0 %v280
        %v369 = vpop.f32.mrb[0].mxu0
        %v370 = vadd.f32 0.0, %v369
        %v371 = vpop.f32.mrb[0].mxu0
        %372 = vmatprep.mubr.f32.mxu0 0.0
        %373 = vmatmul.mubr.f32.gmra.mrb[0].mxu0 %v283
        %v374 = vpop.f32.mrb[0].mxu0
        %v375 = vadd.f32 0.0, %v374
        %v376 = vpop.f32.mrb[0].mxu0
        %377 = vmatprep.mubr.f32.mxu0 0.0
        %378 = vmatmul.mubr.f32.gmra.mrb[0].mxu0 %v286
        %v379 = vpop.f32.mrb[0].mxu0
        %v380 = vadd.f32 0.0, %v379
        %v381 = vpop.f32.mrb[0].mxu0
        %382 = vmatprep.mubr.f32.mxu0 0.0
        %383 = vmatmul.mubr.f32.gmra.mrb[0].mxu0 %v289
        %v384 = vpop.f32.mrb[0].mxu0
        %v385 = vadd.f32 0.0, %v384
        %v386 = vpop.f32.mrb[0].mxu0
        %387 = vmatprep.mubr.f32.mxu0 0.0
        %388 = vmatmul.mubr.f32.gmra.mrb[0].mxu0 %v292
        %v389 = vpop.f32.mrb[0].mxu0
        %v390 = vadd.f32 0.0, %v389
        %v391 = vpop.f32.mrb[0].mxu0
        %392 = vmatprep.mubr.f32.mxu0 0.0
        %393 = vmatmul.mubr.f32.gmra.mrb[0].mxu0 %v295
        %v394 = vpop.f32.mrb[0].mxu0
        %v395 = vadd.f32 0.0, %v394
        %v396 = vpop.f32.mrb[0].mxu0
        %397 = vmatprep.mubr.f32.mxu0 0.0
        %398 = vmatmul.mubr.f32.gmra.mrb[0].mxu0 %v298
        %v399 = vpop.f32.mrb[0].mxu0
        %v400 = vadd.f32 0.0, %v399
        %v401 = vpop.f32.mrb[0].mxu0
        %402 = vmatprep.mubr.f32.mxu0 0.0
        %403 = vmatmul.mubr.f32.gmra.mrb[0].mxu0 %v301
        %v404 = vpop.f32.mrb[0].mxu0
        %v405 = vadd.f32 0.0, %v404
        %v406 = vpop.f32.mrb[0].mxu0
        %407 = vdwg.mxu0
        %v408 = vmul.f32 %v370, %v268
        %v409 = vmul.f32 %v375, %v269
        %v410 = vmul.f32 %v380, %v268
        %v411 = vmul.f32 %v385, %v269
        %v412 = vmul.f32 %v390, %v268
        %v413 = vmul.f32 %v395, %v269
        %v414 = vmul.f32 %v400, %v268
        %v415 = vmul.f32 %v405, %v269
        %v416 = vadd.f32 %v408, %v409
        %v417 = vrot.slane %v416, 4
        %v418 = vadd.f32 %v416, %v417
        %v419 = vrot.slane %v418, 2
        %v420 = vadd.f32 %v418, %v419
        %v421 = vrot.slane %v420, 1
        %v422 = vadd.f32 %v420, %v421
        %v423 = vadd.f32 %v410, %v411
        %v424 = vrot.slane %v423, 4
        %v425 = vadd.f32 %v423, %v424
        %v426 = vrot.slane %v425, 2
        %v427 = vadd.f32 %v425, %v426
        %v428 = vrot.slane %v427, 1
        %v429 = vadd.f32 %v427, %v428
        %v430 = vadd.f32 %v412, %v413
        %v431 = vrot.slane %v430, 4
        %v432 = vadd.f32 %v430, %v431
        %v433 = vrot.slane %v432, 2
        %v434 = vadd.f32 %v432, %v433
        %v435 = vrot.slane %v434, 1
        %v436 = vadd.f32 %v434, %v435
        %v437 = vadd.f32 %v414, %v415
        %v438 = vrot.slane %v437, 4
        %v439 = vadd.f32 %v437, %v438
        %v440 = vrot.slane %v439, 2
        %v441 = vadd.f32 %v439, %v440
        %v442 = vrot.slane %v441, 1
        %v443 = vadd.f32 %v441, %v442
        %vm448 = vcmask 1041409
        %v449 = vsel %vm448, %v429, %v422
        %vm450 = vcmask 1042434
        %v451 = vsel %vm450, %v436, %v449
        %vm452 = vcmask 1043459
        %v453 = vsel %vm452, %v443, %v451
        %455 = vst [vmem:[%s173] sm:$0xf] %v453
        %s456 = sand.u32 %s92, 1
        %s457 = scalar_lea.sflag [#allocation3], %s456
        %s458 = sand.u32 %s92, 1
        %s459 = smul.addr %s458, 4
        %s460 = scalar_lea.vmem [#allocation2], %s459
        // Predicated region
        $region29: #{tpu_custom_call.1} parent=27 // pred_check
          %p461 = pneg %p102
        $region30: #{tpu_custom_call.1} parent=27 // pred_check_branch
          %463 = sbr.rel (%p461) target = $region32
        $region31: #{tpu_custom_call.1} parent=27 // pred_region
          %s465 = ssub.s32 64, 64
          %466 = vsyncadd %s457, %s465
          %s467 = smul.addr %s20, 2
          %s468 = sadd.s32 %s21, %s467
          %s469 = smul.addr %s468, 64
          %s470 = scalar_lea.hbm %s2, %s469
          %s472 = sshll.u32 %s460, 4
          %s473 = int_to_ptr.vmem [resolvable:$true] %s472
          %475 = dma.vmem_to_hbm [thread:$0]  %s473, 64, %s470, %s457
        $region32: #{tpu_custom_call.1} parent=27 // pred_fallthru
          _
      $region28: #{tpu_custom_call.1} parent=5 // pred_fallthru
        _
      %p476 = scmp.le.s32.totalorder 2, %s11
      // Predicated region
      $region33: #{tpu_custom_call.1} parent=5 // pred_check
        %p477 = pneg %p476
      $region34: #{tpu_custom_call.1} parent=5 // pred_check_branch
        %479 = sbr.rel (%p477) target = $region36
      $region35: #{tpu_custom_call.1} parent=5 // pred_region
        %s480 = ssub.s32 %s11, 2
        // Predicated region
        $region37: #{tpu_custom_call.1} parent=35 // pred_check
          %p481 = pneg %p108
        $region38: #{tpu_custom_call.1} parent=35 // pred_check_branch
          %483 = sbr.rel (%p481) target = $region40
        $region39: #{tpu_custom_call.1} parent=35 // pred_region
          %s484 = sand.u32 %s93, 1
          %s485 = scalar_lea.sflag [#allocation3], %s484
          %s486 = sand.u32 %s93, 1
          %s487 = smul.addr %s486, 4
          %s488 = scalar_lea.vmem [#allocation2], %s487
          %489 = dma.done %s485, 64
        $region40: #{tpu_custom_call.1} parent=35 // pred_fallthru
          _
      $region36: #{tpu_custom_call.1} parent=5 // pred_fallthru
        _
    $region6: #{tpu_custom_call.1} parent=1 // loop_footer
      %s15 = sadd.s32 1, %s11
    $region7: #{tpu_custom_call.1} parent=1 // loop_footer_branch
      %10 = sbr.rel target = $region3
    $region8: #{tpu_custom_call.1} parent=1 // loop_exit
      _
    %490 = vsyncpa [#allocation3], 1
    %s491 = scalar_lea.sflag [#allocation3], 1
    %492 = vsyncpa %s491, 1

</llo_original>
